<compile_context>
chip_gen: v5e
topology: v5e:2x2
jax: 0.10.0
libtpu: 0.0.40
codegen_flags: <defaults>
</compile_context>

<pallas_src>
import math

import jax
import jax.numpy as jnp
from jax.experimental import pallas as pl
from jax.experimental.pallas import tpu as pltpu


def _round_up(a, m):
    return (a + m - 1) // m * m


def make_arcface_kernel(num_classes, scale, cos_m, sin_m, min_cos, margin_am):
    """Builds the Pallas kernel with the margin constants baked in."""

    def kernel(emb_ref, w_ref, invwn_ref, lab_ref, out_ref, m_sc, l_sc, t_sc):
        j = pl.program_id(1)

        @pl.when(j == 0)
        def _():
            m_sc[...] = jnp.full_like(m_sc, -jnp.inf)
            l_sc[...] = jnp.zeros_like(l_sc)
            t_sc[...] = jnp.zeros_like(t_sc)

        # ---- L2-normalize the embedding rows (f32), cast to bf16 for MXU ----
        x = emb_ref[...]                                           # (tb, E) f32
        ss = jnp.sum(x * x, axis=1, keepdims=True)                 # (tb, 1)
        inv_xn = 1.0 / jnp.maximum(jnp.sqrt(ss), 1e-12)
        xb = (x * inv_xn).astype(jnp.bfloat16)

        # ---- cosine logits on the MXU; column-scale by 1/||w_j|| after ----
        cos = jnp.dot(xb, w_ref[...], preferred_element_type=jnp.float32)
        cos = cos * invwn_ref[...]                                 # (tb,tc)*(1,tc)
        cos = jnp.clip(cos, -1.0, 1.0)

        tb, tc = cos.shape
        col = jax.lax.broadcasted_iota(jnp.int32, (tb, tc), 1) + j * tc
        lab = lab_ref[...]                                         # (tb, 1) int32
        is_tgt = col == lab                                        # (tb, tc) bool

        # ---- ArcFace margin only on the gathered (tb,1) target logit ----
        tgt_cos = jnp.sum(jnp.where(is_tgt, cos, 0.0), axis=1, keepdims=True)
        sin_t = jnp.sqrt(jnp.maximum(1.0 - tgt_cos * tgt_cos, 0.0))
        cos_t_m = tgt_cos * cos_m - sin_t * sin_m
        mod = jnp.where(tgt_cos > min_cos, cos_t_m, tgt_cos - margin_am)

        logits = jnp.where(is_tgt, mod, cos) * scale
        # Kill padded class columns (never match a label, never enter softmax).
        logits = jnp.where(col < num_classes, logits, jnp.float32(-1e30))

        # Accumulate the (scaled, margin-modified) target logit of rows whose
        # label lies in this class tile; exactly one tile contributes per row.
        t_sc[...] += jnp.sum(jnp.where(is_tgt, logits, 0.0), axis=1, keepdims=True)

        # ---- online logsumexp across class tiles ----
        m_old = m_sc[...]
        m_new = jnp.maximum(m_old, jnp.max(logits, axis=1, keepdims=True))
        alpha = jnp.exp(m_old - m_new)
        l_sc[...] = l_sc[...] * alpha + jnp.sum(jnp.exp(logits - m_new),
                                                axis=1, keepdims=True)
        m_sc[...] = m_new

        @pl.when(j == pl.num_programs(1) - 1)
        def _():
            # per-row cross-entropy: logsumexp - target_logit
            out_ref[...] = m_sc[...] + jnp.log(l_sc[...]) - t_sc[...]

    return kernel


def arcface_v2_loss(feats, labels, weight, *, scale, margin_arc, margin_am,
                    block_b=None, block_c=None):
    """JAX wrapper: padding / tiling glue around a single tiled pallas_call.

    feats:  (B, E) float
    labels: (B,)   int
    weight: (E, C) float   (same layout as the PyTorch Parameter)
    """
    B, E = feats.shape
    E2, C = weight.shape
    assert E == E2, (feats.shape, weight.shape)

    cos_m = math.cos(margin_arc)
    sin_m = math.sin(margin_arc)
    min_cos = math.cos(math.pi - margin_arc)

    # F.normalize(weight, dim=0) as a post-matmul column scale (1, C).
    w_f32 = weight.astype(jnp.float32)
    col_norm = jnp.sqrt(jnp.sum(w_f32 * w_f32, axis=0, keepdims=True))
    inv_wn = 1.0 / jnp.maximum(col_norm, 1e-12)                    # (1, C)

    # ---- tile sizes (lane-friendly) & padding ----
    Epad = _round_up(max(E, 1), 128)
    tb = block_b if block_b is not None else min(256, _round_up(B, 8))
    tb = _round_up(tb, 8)
    Bpad = _round_up(B, tb)
    tc = block_c if block_c is not None else min(1024, _round_up(C, 128))
    tc = _round_up(tc, 128)
    Cpad = _round_up(C, tc)

    x_pad = jnp.zeros((Bpad, Epad), jnp.float32).at[:B, :E].set(
        feats.astype(jnp.float32))
    w_pad = jnp.zeros((Epad, Cpad), jnp.bfloat16).at[:E, :C].set(
        weight.astype(jnp.bfloat16))                               # bf16 stream
    invwn_pad = jnp.zeros((1, Cpad), jnp.float32).at[:, :C].set(inv_wn)
    lab_pad = jnp.zeros((Bpad, 1), jnp.int32).at[:B, 0].set(
        labels.astype(jnp.int32))

    grid = (Bpad // tb, Cpad // tc)
    kernel = make_arcface_kernel(C, float(scale), cos_m, sin_m, min_cos,
                                 float(margin_am))

    out = pl.pallas_call(
        kernel,
        out_shape=jax.ShapeDtypeStruct((Bpad, 1), jnp.float32),
        grid_spec=pltpu.PrefetchScalarGridSpec(
            num_scalar_prefetch=0,
            grid=grid,
            in_specs=[
                pl.BlockSpec((tb, Epad), lambda i, j: (i, 0)),      # embeddings
                pl.BlockSpec((Epad, tc), lambda i, j: (0, j)),      # weight (E,C)
                pl.BlockSpec((1, tc), lambda i, j: (0, j)),         # 1/||w_col||
                pl.BlockSpec((tb, 1), lambda i, j: (i, 0)),         # labels
            ],
            out_specs=pl.BlockSpec((tb, 1), lambda i, j: (i, 0)),   # per-row loss
            scratch_shapes=[pltpu.VMEM((tb, 1), jnp.float32)] * 3,  # m, l, tgt
        ),
        compiler_params=pltpu.CompilerParams(
            dimension_semantics=("parallel", "arbitrary"),
            vmem_limit_bytes=48 * 1024 * 1024,
        ),
        cost_estimate=pl.CostEstimate(
            flops=int(2 * Bpad * Epad * Cpad),
            transcendentals=int(Bpad * Cpad),
            bytes_accessed=int(grid[0] * Epad * Cpad * 2     # bf16 weight stream
                               + grid[1] * Bpad * Epad * 4   # f32 embeddings
                               + grid[0] * Cpad * 4          # inv col norms
                               + Bpad * 8),
        ),
    )(x_pad, w_pad, invwn_pad, lab_pad)

    # CrossEntropyLoss default reduction: mean over the batch.
    return jnp.mean(out[:B, 0])


def _reference_loss(feats, labels, weight, scale, margin_arc, margin_am):
    """Pure-JAX reference of the PyTorch forward (f32 everywhere)."""
    cos_m = math.cos(margin_arc)
    sin_m = math.sin(margin_arc)
    min_cos = math.cos(math.pi - margin_arc)
    w = weight.astype(jnp.float32)
    f = feats.astype(jnp.float32)
    wn = w / jnp.maximum(jnp.linalg.norm(w, axis=0, keepdims=True), 1e-12)
    fn = f / jnp.maximum(jnp.linalg.norm(f, axis=1, keepdims=True), 1e-12)
    cos = jnp.clip(fn @ wn, -1.0, 1.0)
    sin = jnp.sqrt(jnp.maximum(1.0 - cos * cos, 0.0))
    cos_tm = cos * cos_m - sin * sin_m
    cos_tm = jnp.where(cos > min_cos, cos_tm, cos - margin_am)
    onehot = labels[:, None] == jnp.arange(w.shape[1])[None, :]
    out = jnp.where(onehot, cos_tm, cos) * scale
    logp = jax.nn.log_softmax(out, axis=1)
    return -jnp.mean(jnp.sum(jnp.where(onehot, logp, 0.0), axis=1))


if __name__ == "__main__":
    key = jax.random.PRNGKey(0)
    k_f, k_l, k_w = jax.random.split(key, 3)

    # Small demo config: embedding_size=128, num_classes=1500 (not a multiple
    # of the class tile, so the padding mask path is exercised).
    B, E, C = 16, 128, 1500
    scale, margin_arc, margin_am = 64.0, 0.5, 0.4

    feats = jax.random.normal(k_f, (B, E), dtype=jnp.float32)
    labels = jax.random.randint(k_l, (B,), 0, C, dtype=jnp.int32)
    # approximates weight.uniform_(-1,1).renorm_(2,1,1e-5).mul_(1e5): columns
    # with L2 norm capped at 1.
    w = jax.random.uniform(k_w, (E, C), jnp.float32, -1.0, 1.0)
    cn = jnp.linalg.norm(w, axis=0, keepdims=True)
    w = w * jnp.minimum(1.0, 1.0 / jnp.maximum(cn, 1e-12))

    loss = arcface_v2_loss(feats, labels, w, scale=scale,
                           margin_arc=margin_arc, margin_am=margin_am,
                           block_b=8, block_c=512)   # grid = (2, 3) for the demo
    loss = jax.block_until_ready(loss)

    ref = _reference_loss(feats, labels, w, scale, margin_arc, margin_am)
    ref = jax.block_until_ready(ref)
    # bf16 MXU inputs -> allow a loose tolerance versus the f32 reference.
    assert abs(float(loss) - float(ref)) <= 0.5 + 0.05 * abs(float(ref)), (
        float(loss), float(ref))
    print("KERNEL_OK")
</pallas_src>

<mosaic_0001>
module attributes {stable_mosaic.version = 11 : i64} {
  func.func @kernel(%arg0: i32, %arg1: i32, %arg2: memref<8x128xf32, #tpu.memory_space<vmem>>, %arg3: memref<128x512xbf16, #tpu.memory_space<vmem>>, %arg4: memref<1x512xf32, #tpu.memory_space<vmem>>, %arg5: memref<8x1xi32, #tpu.memory_space<vmem>>, %arg6: memref<8x1xf32, #tpu.memory_space<vmem>>, %arg7: memref<8x1xf32, #tpu.memory_space<vmem>>, %arg8: memref<8x1xf32, #tpu.memory_space<vmem>>, %arg9: memref<8x1xf32, #tpu.memory_space<vmem>>) attributes {dimension_semantics = [#tpu.dimension_semantics<parallel>, #tpu.dimension_semantics<arbitrary>], iteration_bounds = array<i64: 2, 3>, scalar_prefetch = 0 : i64, scratch_operands = 3 : i64, tpu.core_type = #tpu.core_type<tc>, window_params = [{transform_indices = @transform_0, window_bounds = array<i64: 8, 128>}, {transform_indices = @transform_1, window_bounds = array<i64: 128, 512>}, {transform_indices = @transform_2, window_bounds = array<i64: 1, 512>}, {transform_indices = @transform_3, window_bounds = array<i64: 8, 1>}, {transform_indices = @transform_4, window_bounds = array<i64: 8, 1>}]} {
    %c0_i32 = arith.constant 0 : i32
    %0 = arith.cmpi eq, %arg1, %c0_i32 : i32
    %1 = arith.extui %0 : i1 to i32
    %c0_i32_0 = arith.constant 0 : i32
    %2 = arith.cmpi ne, %1, %c0_i32_0 : i32
    scf.if %2 {
      %cst_40 = arith.constant 0xFF800000 : f32
      %86 = vector.broadcast %cst_40 : f32 to vector<8x1xf32>
      %c0_41 = arith.constant 0 : index
      %c0_42 = arith.constant 0 : index
      %87 = vector.load %arg7[%c0_41, %c0_42] : memref<8x1xf32, #tpu.memory_space<vmem>>, vector<8x1xf32>
      tpu.vector_store %arg7[%c0_41, %c0_42], %86 {strides = array<i32>} : memref<8x1xf32, #tpu.memory_space<vmem>>, vector<8x1xf32>,
      %cst_43 = arith.constant 0.000000e+00 : f32
      %88 = vector.broadcast %cst_43 : f32 to vector<8x1xf32>
      %c0_44 = arith.constant 0 : index
      %c0_45 = arith.constant 0 : index
      %89 = vector.load %arg8[%c0_44, %c0_45] : memref<8x1xf32, #tpu.memory_space<vmem>>, vector<8x1xf32>
      tpu.vector_store %arg8[%c0_44, %c0_45], %88 {strides = array<i32>} : memref<8x1xf32, #tpu.memory_space<vmem>>, vector<8x1xf32>,
      %cst_46 = arith.constant 0.000000e+00 : f32
      %90 = vector.broadcast %cst_46 : f32 to vector<8x1xf32>
      %c0_47 = arith.constant 0 : index
      %c0_48 = arith.constant 0 : index
      %91 = vector.load %arg9[%c0_47, %c0_48] : memref<8x1xf32, #tpu.memory_space<vmem>>, vector<8x1xf32>
      tpu.vector_store %arg9[%c0_47, %c0_48], %90 {strides = array<i32>} : memref<8x1xf32, #tpu.memory_space<vmem>>, vector<8x1xf32>,
    } else {
    }
    %c0 = arith.constant 0 : index
    %c0_1 = arith.constant 0 : index
    %3 = vector.load %arg2[%c0, %c0_1] : memref<8x128xf32, #tpu.memory_space<vmem>>, vector<8x128xf32>
    %4 = arith.mulf %3, %3 : vector<8x128xf32>
    %cst = arith.constant dense<0.000000e+00> : vector<8xf32>
    %5 = vector.multi_reduction <add>, %4, %cst [1] : vector<8x128xf32> to vector<8xf32>
    %6 = vector.shape_cast %5 : vector<8xf32> to vector<8x1xf32>
    %7 = math.sqrt %6 : vector<8x1xf32>
    %cst_2 = arith.constant 9.99999996E-13 : f32
    %8 = vector.broadcast %cst_2 : f32 to vector<8x1xf32>
    %9 = arith.maximumf %7, %8 : vector<8x1xf32>
    %cst_3 = arith.constant 1.000000e+00 : f32
    %10 = vector.broadcast %cst_3 : f32 to vector<8x1xf32>
    %11 = arith.divf %10, %9 : vector<8x1xf32>
    %12 = vector.broadcast %11 : vector<8x1xf32> to vector<8x128xf32>
    %13 = arith.mulf %3, %12 : vector<8x128xf32>
    %14 = arith.truncf %13 : vector<8x128xf32> to vector<8x128xbf16>
    %c0_4 = arith.constant 0 : index
    %c0_5 = arith.constant 0 : index
    %15 = vector.load %arg3[%c0_4, %c0_5] : memref<128x512xbf16, #tpu.memory_space<vmem>>, vector<128x512xbf16>
    %cst_6 = arith.constant dense<0.000000e+00> : vector<8x512xf32>
    %16 = tpu.matmul %14, %15, %cst_6 {dimension_numbers = #tpu.dot_dimension_numbers<[1], [0], [0], [1], [0, 0, 1, 1], [], []>} : vector<8x128xbf16>, vector<128x512xbf16>, vector<8x512xf32> -> vector<8x512xf32>
    %c0_7 = arith.constant 0 : index
    %c0_8 = arith.constant 0 : index
    %17 = vector.load %arg4[%c0_7, %c0_8] : memref<1x512xf32, #tpu.memory_space<vmem>>, vector<1x512xf32>
    %18 = vector.broadcast %17 : vector<1x512xf32> to vector<8x512xf32>
    %19 = arith.mulf %16, %18 : vector<8x512xf32>
    %cst_9 = arith.constant -1.000000e+00 : f32
    %cst_10 = arith.constant 1.000000e+00 : f32
    %20 = vector.broadcast %cst_9 : f32 to vector<8x512xf32>
    %21 = arith.maximumf %20, %19 : vector<8x512xf32>
    %22 = vector.broadcast %cst_10 : f32 to vector<8x512xf32>
    %23 = arith.minimumf %22, %21 : vector<8x512xf32>
    %24 = tpu.iota {dimensions = array<i32: 1>} : vector<8x512xi32>
    %c512_i32 = arith.constant 512 : i32
    %25 = arith.muli %arg1, %c512_i32 : i32
    %26 = vector.broadcast %25 : i32 to vector<8x512xi32>
    %27 = arith.addi %24, %26 : vector<8x512xi32>
    %c0_11 = arith.constant 0 : index
    %c0_12 = arith.constant 0 : index
    %28 = vector.load %arg5[%c0_11, %c0_12] : memref<8x1xi32, #tpu.memory_space<vmem>>, vector<8x1xi32>
    %29 = vector.broadcast %28 : vector<8x1xi32> to vector<8x512xi32>
    %30 = arith.cmpi eq, %27, %29 : vector<8x512xi32>
    %cst_13 = arith.constant 0.000000e+00 : f32
    %31 = vector.broadcast %cst_13 : f32 to vector<8x512xf32>
    %32 = arith.select %30, %23, %31 : vector<8x512xi1>, vector<8x512xf32>
    %cst_14 = arith.constant dense<0.000000e+00> : vector<8xf32>
    %33 = vector.multi_reduction <add>, %32, %cst_14 [1] : vector<8x512xf32> to vector<8xf32>
    %34 = vector.shape_cast %33 : vector<8xf32> to vector<8x1xf32>
    %35 = arith.mulf %34, %34 : vector<8x1xf32>
    %cst_15 = arith.constant 1.000000e+00 : f32
    %36 = vector.broadcast %cst_15 : f32 to vector<8x1xf32>
    %37 = arith.subf %36, %35 : vector<8x1xf32>
    %cst_16 = arith.constant 0.000000e+00 : f32
    %38 = vector.broadcast %cst_16 : f32 to vector<8x1xf32>
    %39 = arith.maximumf %37, %38 : vector<8x1xf32>
    %40 = math.sqrt %39 : vector<8x1xf32>
    %cst_17 = arith.constant 0.87758255 : f32
    %41 = vector.broadcast %cst_17 : f32 to vector<8x1xf32>
    %42 = arith.mulf %34, %41 : vector<8x1xf32>
    %cst_18 = arith.constant 0.47942555 : f32
    %43 = vector.broadcast %cst_18 : f32 to vector<8x1xf32>
    %44 = arith.mulf %40, %43 : vector<8x1xf32>
    %45 = arith.subf %42, %44 : vector<8x1xf32>
    %cst_19 = arith.constant -0.87758255 : f32
    %46 = vector.broadcast %cst_19 : f32 to vector<8x1xf32>
    %47 = arith.cmpf ogt, %34, %46 : vector<8x1xf32>
    %cst_20 = arith.constant 4.000000e-01 : f32
    %48 = vector.broadcast %cst_20 : f32 to vector<8x1xf32>
    %49 = arith.subf %34, %48 : vector<8x1xf32>
    %50 = arith.select %47, %45, %49 : vector<8x1xi1>, vector<8x1xf32>
    %51 = vector.shape_cast %50 : vector<8x1xf32> to vector<8x1xf32>
    %52 = vector.broadcast %51 : vector<8x1xf32> to vector<8x512xf32>
    %53 = arith.select %30, %52, %23 : vector<8x512xi1>, vector<8x512xf32>
    %cst_21 = arith.constant 6.400000e+01 : f32
    %54 = vector.broadcast %cst_21 : f32 to vector<8x512xf32>
    %55 = arith.mulf %53, %54 : vector<8x512xf32>
    %c1500_i32 = arith.constant 1500 : i32
    %56 = vector.broadcast %c1500_i32 : i32 to vector<8x512xi32>
    %57 = arith.cmpi slt, %27, %56 : vector<8x512xi32>
    %cst_22 = arith.constant -1.000000e+30 : f32
    %58 = vector.broadcast %cst_22 : f32 to vector<8x512xf32>
    %59 = arith.select %57, %55, %58 : vector<8x512xi1>, vector<8x512xf32>
    %c0_23 = arith.constant 0 : index
    %c0_24 = arith.constant 0 : index
    %60 = vector.load %arg9[%c0_23, %c0_24] : memref<8x1xf32, #tpu.memory_space<vmem>>, vector<8x1xf32>
    %cst_25 = arith.constant 0.000000e+00 : f32
    %61 = vector.broadcast %cst_25 : f32 to vector<8x512xf32>
    %62 = arith.select %30, %59, %61 : vector<8x512xi1>, vector<8x512xf32>
    %cst_26 = arith.constant dense<0.000000e+00> : vector<8xf32>
    %63 = vector.multi_reduction <add>, %62, %cst_26 [1] : vector<8x512xf32> to vector<8xf32>
    %64 = vector.shape_cast %63 : vector<8xf32> to vector<8x1xf32>
    %65 = arith.addf %60, %64 : vector<8x1xf32>
    %c0_27 = arith.constant 0 : index
    %c0_28 = arith.constant 0 : index
    %66 = vector.load %arg9[%c0_27, %c0_28] : memref<8x1xf32, #tpu.memory_space<vmem>>, vector<8x1xf32>
    tpu.vector_store %arg9[%c0_27, %c0_28], %65 {strides = array<i32>} : memref<8x1xf32, #tpu.memory_space<vmem>>, vector<8x1xf32>,
    %c0_29 = arith.constant 0 : index
    %c0_30 = arith.constant 0 : index
    %67 = vector.load %arg7[%c0_29, %c0_30] : memref<8x1xf32, #tpu.memory_space<vmem>>, vector<8x1xf32>
    %cst_31 = arith.constant dense<0xFF800000> : vector<8xf32>
    %68 = vector.multi_reduction <maximumf>, %59, %cst_31 [1] : vector<8x512xf32> to vector<8xf32>
    %69 = vector.shape_cast %68 : vector<8xf32> to vector<8x1xf32>
    %70 = arith.maximumf %67, %69 : vector<8x1xf32>
    %71 = arith.subf %67, %70 : vector<8x1xf32>
    %72 = math.exp %71 : vector<8x1xf32>
    %c0_32 = arith.constant 0 : index
    %c0_33 = arith.constant 0 : index
    %73 = vector.load %arg8[%c0_32, %c0_33] : memref<8x1xf32, #tpu.memory_space<vmem>>, vector<8x1xf32>
    %74 = arith.mulf %73, %72 : vector<8x1xf32>
    %75 = vector.broadcast %70 : vector<8x1xf32> to vector<8x512xf32>
    %76 = arith.subf %59, %75 : vector<8x512xf32>
    %77 = math.exp %76 : vector<8x512xf32>
    %cst_34 = arith.constant dense<0.000000e+00> : vector<8xf32>
    %78 = vector.multi_reduction <add>, %77, %cst_34 [1] : vector<8x512xf32> to vector<8xf32>
    %79 = vector.shape_cast %78 : vector<8xf32> to vector<8x1xf32>
    %80 = arith.addf %74, %79 : vector<8x1xf32>
    %c0_35 = arith.constant 0 : index
    %c0_36 = arith.constant 0 : index
    %81 = vector.load %arg8[%c0_35, %c0_36] : memref<8x1xf32, #tpu.memory_space<vmem>>, vector<8x1xf32>
    tpu.vector_store %arg8[%c0_35, %c0_36], %80 {strides = array<i32>} : memref<8x1xf32, #tpu.memory_space<vmem>>, vector<8x1xf32>,
    %c0_37 = arith.constant 0 : index
    %c0_38 = arith.constant 0 : index
    %82 = vector.load %arg7[%c0_37, %c0_38] : memref<8x1xf32, #tpu.memory_space<vmem>>, vector<8x1xf32>
    tpu.vector_store %arg7[%c0_37, %c0_38], %70 {strides = array<i32>} : memref<8x1xf32, #tpu.memory_space<vmem>>, vector<8x1xf32>,
    %c2_i32 = arith.constant 2 : i32
    %83 = arith.cmpi eq, %arg1, %c2_i32 : i32
    %84 = arith.extui %83 : i1 to i32
    %c0_i32_39 = arith.constant 0 : i32
    %85 = arith.cmpi ne, %84, %c0_i32_39 : i32
    scf.if %85 {
      %c0_40 = arith.constant 0 : index
      %c0_41 = arith.constant 0 : index
      %86 = vector.load %arg7[%c0_40, %c0_41] : memref<8x1xf32, #tpu.memory_space<vmem>>, vector<8x1xf32>
      %c0_42 = arith.constant 0 : index
      %c0_43 = arith.constant 0 : index
      %87 = vector.load %arg8[%c0_42, %c0_43] : memref<8x1xf32, #tpu.memory_space<vmem>>, vector<8x1xf32>
      %88 = math.log %87 : vector<8x1xf32>
      %89 = arith.addf %86, %88 : vector<8x1xf32>
      %c0_44 = arith.constant 0 : index
      %c0_45 = arith.constant 0 : index
      %90 = vector.load %arg9[%c0_44, %c0_45] : memref<8x1xf32, #tpu.memory_space<vmem>>, vector<8x1xf32>
      %91 = arith.subf %89, %90 : vector<8x1xf32>
      %c0_46 = arith.constant 0 : index
      %c0_47 = arith.constant 0 : index
      %92 = vector.load %arg6[%c0_46, %c0_47] : memref<8x1xf32, #tpu.memory_space<vmem>>, vector<8x1xf32>
      tpu.vector_store %arg6[%c0_46, %c0_47], %91 {strides = array<i32>} : memref<8x1xf32, #tpu.memory_space<vmem>>, vector<8x1xf32>,
    } else {
    }
    return
  }
  func.func @transform_0(%arg0: i32, %arg1: i32) -> (i32, i32) {
    %c0_i32 = arith.constant 0 : i32
    %c0_i32_0 = arith.constant 0 : i32
    return %arg0, %c0_i32 : i32, i32
  }
  func.func @transform_1(%arg0: i32, %arg1: i32) -> (i32, i32) {
    %c0_i32 = arith.constant 0 : i32
    %c0_i32_0 = arith.constant 0 : i32
    return %c0_i32, %arg1 : i32, i32
  }
  func.func @transform_2(%arg0: i32, %arg1: i32) -> (i32, i32) {
    %c0_i32 = arith.constant 0 : i32
    %c0_i32_0 = arith.constant 0 : i32
    return %c0_i32, %arg1 : i32, i32
  }
  func.func @transform_3(%arg0: i32, %arg1: i32) -> (i32, i32) {
    %c0_i32 = arith.constant 0 : i32
    %c0_i32_0 = arith.constant 0 : i32
    return %arg0, %c0_i32 : i32, i32
  }
  func.func @transform_4(%arg0: i32, %arg1: i32) -> (i32, i32) {
    %c0_i32 = arith.constant 0 : i32
    %c0_i32_0 = arith.constant 0 : i32
    return %arg0, %c0_i32 : i32, i32
  }
}

</mosaic_0001>

<llo_original>
// kernel: tpu_custom_call.1
$region0: #{tpu_custom_call.1}
  #allocation0 [shape = 'u32[]', space=smem, size = 0x4, offset = 0x4, fixed_abs, tag = 'smem constant byte address 0x4 - core index']
  #allocation1 [shape = 'u32[72,128]{1,0:T(1,128)}', space=vmem, size = 0x9000, scoped, tag = 'internal scratch']
  #allocation2 [shape = 'f32[8,1]{1,0:T(8,128)}', space=vmem, size = 0x1000, scoped, tag = 'scratch operand']
  #allocation3 [shape = 'f32[8,1]{1,0:T(8,128)}', space=vmem, size = 0x1000, scoped, tag = 'scratch operand']
  #allocation4 [shape = 'f32[8,1]{1,0:T(8,128)}', space=vmem, size = 0x1000, scoped, tag = 'scratch operand']
  %s0 = inlined_call_operand.vmem [shape: f32[16,128], index: 0, kind: input, shape index: {}]
  %s1 = inlined_call_operand.hbm [shape: bf16[128,1536], index: 1, kind: input, shape index: {}]
  %s2 = inlined_call_operand.hbm [shape: f32[1,1536], index: 2, kind: input, shape index: {}]
  %s3 = inlined_call_operand.vmem [shape: s32[16,1], index: 3, kind: input, shape index: {}]
  %s4 = inlined_call_operand.vmem [shape: f32[16,1], index: 4, kind: output, shape index: {}]
  %s5 = sld [smem:[#allocation0]]
  $region65: #{tpu_custom_call.1} parent=0
    _
  %s7 = ssub.s32 1, %s5
  %s8 = scalar_select 0, %s7, %s5
  $region1: #{tpu_custom_call.1} parent=0
    #allocation5 [shape = 'u8[262144]{0}', space=vmem, size = 0x40000, scoped, tag = 'input window, operand 1']
    #allocation6 [shape = 's32[2]{0}', space=sflag, size = 0x8, scoped, tag = 'scoped memory for tpu_custom_call.1']
    #allocation7 [shape = 'u8[4096]{0}', space=vmem, size = 0x1000, scoped, tag = 'input window, operand 2']
    #allocation8 [shape = 's32[2]{0}', space=sflag, size = 0x8, scoped, tag = 'scoped memory for tpu_custom_call.1']
    %9 = vsyncpa [#allocation6], 0
    %s10 = scalar_lea.sflag [#allocation6], 1
    %11 = vsyncpa %s10, 0
    %12 = vsyncpa [#allocation8], 0
    %s13 = scalar_lea.sflag [#allocation8], 1
    %14 = vsyncpa %s13, 0
    loop: start=0, step=1, limit=8
    $region2: #{tpu_custom_call.1} parent=1 // loop_pre_header
      _
    $region3: #{tpu_custom_call.1} parent=1 // loop_header
      %s16 = sphi 0, %s20
      %p17 = scmp.ge.s32.totalorder %s16, 8
      %s23 = sphi 0, %s35
      %s24 = sphi 0, %s31
      %s25 = sphi 0, %s23
      %s26 = sphi 0, %s24
      %s27 = sphi 0, %s25
      %s28 = sphi 0, %s26
      %s38 = sphi 0, %s40
      %s41 = sphi 0, %s38
      %s42 = sphi 0, %s41
      %s58 = sphi 0, %s42
      %s64 = sphi 0, %s66
      %s67 = sphi 0, %s64
      %s68 = sphi 0, %s67
      %s84 = sphi 0, %s68
      %s90 = sphi 0, %s92
      %s93 = sphi 0, %s90
      %s94 = sphi 0, %s93
      %s110 = sphi 0, %s94
      %s116 = sphi 0, %s118
      %s119 = sphi 0, %s116
      %s120 = sphi 0, %s119
      %s136 = sphi 0, %s120
      %s142 = sphi 0, %s144
      %s145 = sphi 0, %s142
      %s146 = sphi 0, %s145
      %s162 = sphi 0, %s146
    $region4: #{tpu_custom_call.1} parent=1 // loop_header_branch
      %19 = sbr.rel (%p17) target = $region8
    $region5: #{tpu_custom_call.1} parent=1 // loop_body
      %s21 = ssub.s32 %s16, 1
      %s22 = ssub.s32 %s16, 2
      %s29 = sadd.s32 1, %s24
      %p30 = scmp.ge.s32.totalorder %s29, 3
      %s31 = scalar_select %p30, 0, %s29
      %s32 = sadd.s32 1, %s23
      %s33 = scalar_select %p30, %s32, %s23
      %p34 = scmp.ge.s32.totalorder %s33, 2
      %s35 = scalar_select %p34, 0, %s33
      %s36 = ssub.s32 %s23, %s35
      %p37 = scmp.eq.s32.totalorder %s36, 0
      %s39 = sadd.s32 %s38, 1
      %s40 = scalar_select %p37, %s38, %s39
      %p43 = pneg %p37
      %p44 = scmp.eq.s32.totalorder %s16, 5
      %p45 = por %p43, %p44
      %p46 = scmp.ne.s32.totalorder %s38, %s41
      %p47 = scmp.eq.s32.totalorder %s16, 0
      %p48 = por %p46, %p47
      %p49 = scmp.ne.s32.totalorder %s38, %s41
      %p50 = scmp.eq.s32.totalorder %s21, 5
      %p51 = por %p49, %p50
      %p52 = scmp.ne.s32.totalorder %s41, %s42
      %p53 = scmp.eq.s32.totalorder %s21, 0
      %p54 = por %p52, %p53
      %p55 = scmp.ne.s32.totalorder %s41, %s42
      %p56 = scmp.eq.s32.totalorder %s22, 5
      %p57 = por %p55, %p56
      %p59 = scmp.ne.s32.totalorder %s42, %s58
      %p60 = scmp.eq.s32.totalorder %s22, 0
      %p61 = por %p59, %p60
      %s62 = ssub.s32 %s24, %s31
      %p63 = scmp.eq.s32.totalorder %s62, 0
      %s65 = sadd.s32 %s64, 1
      %s66 = scalar_select %p63, %s64, %s65
      %p69 = pneg %p63
      %p70 = scmp.eq.s32.totalorder %s16, 5
      %p71 = por %p69, %p70
      %p72 = scmp.ne.s32.totalorder %s64, %s67
      %p73 = scmp.eq.s32.totalorder %s16, 0
      %p74 = por %p72, %p73
      %p75 = scmp.ne.s32.totalorder %s64, %s67
      %p76 = scmp.eq.s32.totalorder %s21, 5
      %p77 = por %p75, %p76
      %p78 = scmp.ne.s32.totalorder %s67, %s68
      %p79 = scmp.eq.s32.totalorder %s21, 0
      %p80 = por %p78, %p79
      %p81 = scmp.ne.s32.totalorder %s67, %s68
      %p82 = scmp.eq.s32.totalorder %s22, 5
      %p83 = por %p81, %p82
      %p85 = scmp.ne.s32.totalorder %s68, %s84
      %p86 = scmp.eq.s32.totalorder %s22, 0
      %p87 = por %p85, %p86
      %s88 = ssub.s32 %s24, %s31
      %p89 = scmp.eq.s32.totalorder %s88, 0
      %s91 = sadd.s32 %s90, 1
      %s92 = scalar_select %p89, %s90, %s91
      %p95 = pneg %p89
      %p96 = scmp.eq.s32.totalorder %s16, 5
      %p97 = por %p95, %p96
      %p98 = scmp.ne.s32.totalorder %s90, %s93
      %p99 = scmp.eq.s32.totalorder %s16, 0
      %p100 = por %p98, %p99
      %p101 = scmp.ne.s32.totalorder %s90, %s93
      %p102 = scmp.eq.s32.totalorder %s21, 5
      %p103 = por %p101, %p102
      %p104 = scmp.ne.s32.totalorder %s93, %s94
      %p105 = scmp.eq.s32.totalorder %s21, 0
      %p106 = por %p104, %p105
      %p107 = scmp.ne.s32.totalorder %s93, %s94
      %p108 = scmp.eq.s32.totalorder %s22, 5
      %p109 = por %p107, %p108
      %p111 = scmp.ne.s32.totalorder %s94, %s110
      %p112 = scmp.eq.s32.totalorder %s22, 0
      %p113 = por %p111, %p112
      %s114 = ssub.s32 %s23, %s35
      %p115 = scmp.eq.s32.totalorder %s114, 0
      %s117 = sadd.s32 %s116, 1
      %s118 = scalar_select %p115, %s116, %s117
      %p121 = pneg %p115
      %p122 = scmp.eq.s32.totalorder %s16, 5
      %p123 = por %p121, %p122
      %p124 = scmp.ne.s32.totalorder %s116, %s119
      %p125 = scmp.eq.s32.totalorder %s16, 0
      %p126 = por %p124, %p125
      %p127 = scmp.ne.s32.totalorder %s116, %s119
      %p128 = scmp.eq.s32.totalorder %s21, 5
      %p129 = por %p127, %p128
      %p130 = scmp.ne.s32.totalorder %s119, %s120
      %p131 = scmp.eq.s32.totalorder %s21, 0
      %p132 = por %p130, %p131
      %p133 = scmp.ne.s32.totalorder %s119, %s120
      %p134 = scmp.eq.s32.totalorder %s22, 5
      %p135 = por %p133, %p134
      %p137 = scmp.ne.s32.totalorder %s120, %s136
      %p138 = scmp.eq.s32.totalorder %s22, 0
      %p139 = por %p137, %p138
      %s140 = ssub.s32 %s23, %s35
      %p141 = scmp.eq.s32.totalorder %s140, 0
      %s143 = sadd.s32 %s142, 1
      %s144 = scalar_select %p141, %s142, %s143
      %p147 = pneg %p141
      %p148 = scmp.eq.s32.totalorder %s16, 5
      %p149 = por %p147, %p148
      %p150 = scmp.ne.s32.totalorder %s142, %s145
      %p151 = scmp.eq.s32.totalorder %s16, 0
      %p152 = por %p150, %p151
      %p153 = scmp.ne.s32.totalorder %s142, %s145
      %p154 = scmp.eq.s32.totalorder %s21, 5
      %p155 = por %p153, %p154
      %p156 = scmp.ne.s32.totalorder %s145, %s146
      %p157 = scmp.eq.s32.totalorder %s21, 0
      %p158 = por %p156, %p157
      %p159 = scmp.ne.s32.totalorder %s145, %s146
      %p160 = scmp.eq.s32.totalorder %s22, 5
      %p161 = por %p159, %p160
      %p163 = scmp.ne.s32.totalorder %s146, %s162
      %p164 = scmp.eq.s32.totalorder %s22, 0
      %p165 = por %p163, %p164
      %p166 = scmp.le.s32.totalorder 1, %s16
      %p167 = scmp.lt.s32.totalorder %s16, 7
      %p168 = pnand %p166, %p167
      %p169 = pneg %p168
      // Predicated region
      $region9: #{tpu_custom_call.1} parent=5 // pred_check
        _
      $region10: #{tpu_custom_call.1} parent=5 // pred_check_branch
        %171 = sbr.rel (%p168) target = $region12
      $region11: #{tpu_custom_call.1} parent=5 // pred_region
        %s172 = ssub.s32 %s16, 1
      $region12: #{tpu_custom_call.1} parent=5 // pred_fallthru
        _
      %p173 = scmp.lt.s32.totalorder %s16, 6
      // Predicated region
      $region13: #{tpu_custom_call.1} parent=5 // pred_check
        %p174 = pneg %p173
      $region14: #{tpu_custom_call.1} parent=5 // pred_check_branch
        %176 = sbr.rel (%p174) target = $region16
      $region15: #{tpu_custom_call.1} parent=5 // pred_region
        // Predicated region
        $region17: #{tpu_custom_call.1} parent=15 // pred_check
          %p177 = pneg %p48
        $region18: #{tpu_custom_call.1} parent=15 // pred_check_branch
          %179 = sbr.rel (%p177) target = $region20
        $region19: #{tpu_custom_call.1} parent=15 // pred_region
          %p180 = scmp.lt.s32.totalorder %s23, 1
          %s181 = scalar_select %p180, %s23, 1
          %s182 = smul.addr %s181, 8
          %s183 = scalar_lea.vmem %s0, %s182
        $region20: #{tpu_custom_call.1} parent=15 // pred_fallthru
          _
        // Predicated region
        $region21: #{tpu_custom_call.1} parent=15 // pred_check
          %p184 = pneg %p74
        $region22: #{tpu_custom_call.1} parent=15 // pred_check_branch
          %186 = sbr.rel (%p184) target = $region24
        $region23: #{tpu_custom_call.1} parent=15 // pred_region
          %s187 = sand.u32 %s64, 1
          %s188 = scalar_lea.sflag [#allocation6], %s187
          %s189 = sand.u32 %s64, 1
          %s190 = smul.addr %s189, 256
          %s191 = scalar_lea.vmem [#allocation5], %s190
          %s192 = smul.u32 4, %s24
          %194 = vsyncadd %s188, 0
          %s195 = smul.addr %s192, 4
          %s196 = scalar_lea.hbm %s1, %s195
          %s197 = sshll.u32 %s196, 4
          %s198 = int_to_ptr.hbm [resolvable:$true] %s197
          %s199 = sshll.u32 %s191, 4
          %s200 = int_to_ptr.vmem [resolvable:$true] %s199
          %205 = dma.hbm_to_vmem [thread:$0]  %s198, 4096, %s200, %s188, 768, 256, 16
        $region24: #{tpu_custom_call.1} parent=15 // pred_fallthru
          _
        // Predicated region
        $region25: #{tpu_custom_call.1} parent=15 // pred_check
          %p206 = pneg %p100
        $region26: #{tpu_custom_call.1} parent=15 // pred_check_branch
          %208 = sbr.rel (%p206) target = $region28
        $region27: #{tpu_custom_call.1} parent=15 // pred_region
          %s209 = sand.u32 %s90, 1
          %s210 = scalar_lea.sflag [#allocation8], %s209
          %s211 = sand.u32 %s90, 1
          %s212 = smul.addr %s211, 4
          %s213 = scalar_lea.vmem [#allocation7], %s212
          %s214 = smul.u32 4, %s24
          %216 = vsyncadd %s210, 0
          %s217 = scalar_lea.hbm %s2, %s214
          %s219 = sshll.u32 %s217, 4
          %s220 = int_to_ptr.hbm [resolvable:$true] %s219
          %s221 = sshll.u32 %s213, 4
          %s222 = int_to_ptr.vmem [resolvable:$true] %s221
          %224 = dma.hbm_to_vmem [thread:$0]  %s220, 64, %s222, %s210
        $region28: #{tpu_custom_call.1} parent=15 // pred_fallthru
          _
        // Predicated region
        $region29: #{tpu_custom_call.1} parent=15 // pred_check
          %p225 = pneg %p126
        $region30: #{tpu_custom_call.1} parent=15 // pred_check_branch
          %227 = sbr.rel (%p225) target = $region32
        $region31: #{tpu_custom_call.1} parent=15 // pred_region
          %p228 = scmp.lt.s32.totalorder %s23, 1
          %s229 = scalar_select %p228, %s23, 1
          %s230 = smul.addr %s229, 8
          %s231 = scalar_lea.vmem %s3, %s230
        $region32: #{tpu_custom_call.1} parent=15 // pred_fallthru
          _
      $region16: #{tpu_custom_call.1} parent=5 // pred_fallthru
        _
      %p232 = scmp.le.s32.totalorder 1, %s16
      %p233 = scmp.lt.s32.totalorder %s16, 7
      %p234 = pnand %p232, %p233
      %p235 = pneg %p234
      // Predicated region
      $region33: #{tpu_custom_call.1} parent=5 // pred_check
        _
      $region34: #{tpu_custom_call.1} parent=5 // pred_check_branch
        %237 = sbr.rel (%p234) target = $region36
      $region35: #{tpu_custom_call.1} parent=5 // pred_region
        %s238 = ssub.s32 %s16, 1
        %s239 = sand.u32 %s67, 1
        %s240 = scalar_lea.sflag [#allocation6], %s239
        %s241 = sand.u32 %s67, 1
        %s242 = smul.addr %s241, 256
        %s243 = scalar_lea.vmem [#allocation5], %s242
        // Predicated region
        $region37: #{tpu_custom_call.1} parent=35 // pred_check
          %p244 = pneg %p80
        $region38: #{tpu_custom_call.1} parent=35 // pred_check_branch
          %246 = sbr.rel (%p244) target = $region40
        $region39: #{tpu_custom_call.1} parent=35 // pred_region
          %248 = dma.done %s240, 4096
        $region40: #{tpu_custom_call.1} parent=35 // pred_fallthru
          _
        %s249 = sand.u32 %s93, 1
        %s250 = scalar_lea.sflag [#allocation8], %s249
        %s251 = sand.u32 %s93, 1
        %s252 = smul.addr %s251, 4
        %s253 = scalar_lea.vmem [#allocation7], %s252
        // Predicated region
        $region41: #{tpu_custom_call.1} parent=35 // pred_check
          %p254 = pneg %p106
        $region42: #{tpu_custom_call.1} parent=35 // pred_check_branch
          %256 = sbr.rel (%p254) target = $region44
        $region43: #{tpu_custom_call.1} parent=35 // pred_region
          %258 = dma.done %s250, 64
        $region44: #{tpu_custom_call.1} parent=35 // pred_fallthru
          _
        %p259 = scmp.lt.s32.totalorder %s25, 1
        %s260 = scalar_select %p259, %s25, 1
        %s261 = smul.addr %s260, 8
        %s262 = scalar_lea.vmem %s0, %s261
        %p263 = pneg %p54
        %p264 = pneg %p51
        %s265 = sand.u32 %s67, 1
        %s266 = scalar_lea.sflag [#allocation6], %s265
        %s267 = sand.u32 %s67, 1
        %s268 = smul.addr %s267, 256
        %s269 = scalar_lea.vmem [#allocation5], %s268
        %p270 = pneg %p80
        %p271 = pneg %p77
        %s272 = sand.u32 %s93, 1
        %s273 = scalar_lea.sflag [#allocation8], %s272
        %s274 = sand.u32 %s93, 1
        %s275 = smul.addr %s274, 4
        %s276 = scalar_lea.vmem [#allocation7], %s275
        %p277 = pneg %p106
        %p278 = pneg %p103
        %p279 = scmp.lt.s32.totalorder %s25, 1
        %s280 = scalar_select %p279, %s25, 1
        %s281 = smul.addr %s280, 8
        %s282 = scalar_lea.vmem %s3, %s281
        %p283 = pneg %p132
        %p284 = pneg %p129
        %p285 = pneg %p158
        %p286 = pneg %p155
        %p287 = scmp.lt.s32.totalorder %s25, 1
        %s288 = scalar_select %p287, %s25, 1
        %s289 = smul.addr %s288, 8
        %s290 = scalar_lea.vmem %s4, %s289
        %p291 = scmp.lt.s32.totalorder %s25, 1
        %s292 = scalar_select %p291, %s25, 1
        %s293 = smul.addr %s292, 8
        %s294 = scalar_lea.vmem %s0, %s293
        %s295 = smul.u32 4, %s26
        %s296 = smul.u32 4, %s26
        %p297 = scmp.lt.s32.totalorder %s25, 1
        %s298 = scalar_select %p297, %s25, 1
        %s299 = smul.addr %s298, 8
        %s300 = scalar_lea.vmem %s3, %s299
        %p301 = scmp.lt.s32.totalorder %s25, 1
        %s302 = scalar_select %p301, %s25, 1
        %s303 = smul.addr %s302, 8
        %s304 = scalar_lea.vmem %s4, %s303
        %p305 = scmp.eq.s32.totalorder %s26, 0
        // Predicated region
        $region45: #{tpu_custom_call.1} parent=35 // pred_check
          %p306 = pneg %p305
        $region46: #{tpu_custom_call.1} parent=35 // pred_check_branch
          %308 = sbr.rel (%p306) target = $region48
        $region47: #{tpu_custom_call.1} parent=35 // pred_region
          %vm309 = vcmask 7168
          %310 = vst.msk [vmem:[#allocation2] sm:$0xff] %vm309, -inf
          %311 = vst.msk [vmem:[#allocation3] sm:$0xff] %vm309, 0.0
          %312 = vst.msk [vmem:[#allocation4] sm:$0xff] %vm309, 0.0
        $region48: #{tpu_custom_call.1} parent=35 // pred_fallthru
          _
        %v313 = vld [vmem:[%s294] sm:$0xff]
        %v314 = vmul.f32 %v313, %v313
        %315 = vadd.xlane.f32.xlu0 %v314
        %v316 = vpop.xlane.xlu0 %315
        %v317 = vrsqrt.pop %v316
        %v318 = vmul.f32 %v317, %v316
        %v319 = vmul.f32 %v318, %v317
        %v320 = vmul.f32 0.5, %v319
        %v321 = vsub.f32 1.5, %v320
        %v322 = vmul.f32 %v317, %v321
        %v323 = vmul.f32 %v316, %v322
        %vm324 = vcmp.eq.f32.partialorder %v316, inf
        %v325 = vsel %vm324, %v316, %v323
        %vm326 = vcmp.eq.f32.partialorder %v316, 0.0
        %v327 = vand.u32 %v316, 2147483648
        %v328 = vsel %vm326, %v327, %v325
        %v329 = vmax.f32 %v328, 1e-12
        %v330 = vrcp.pop %v329
        %v331 = vmul.f32 %v329, %v330
        %v332 = vsub.f32 1.0, %v331
        %v333 = vmul.f32 %v330, %v332
        %v334 = vadd.f32 %v330, %v333
        %vm335 = vweird.f32 %v329
        %vm336 = vweird.f32 %v330
        %vm337 = vmor %vm335, %vm336
        %v338 = vsel %vm337, %v330, %v334
        %v339 = vand.u32 2147483647, %v329
        %vm340 = vcmp.eq.f32.partialorder %v339, 8.507059e+37
        %v341 = vand.u32 %v329, 2147483648
        %v342 = vor.u32 1.1754944e-38, %v341
        %v343 = vsel %vm340, %v342, %v338
        %v344 = vmul.f32 1.0, %v343
        %v345 = vmul.f32 %v313, %v344
        %v346 = vpack.c.bf16 %v345, %v345
        %v347 = vld [vmem:[%s243] sm:$0xff]
        %v348 = vld [vmem:[%s243 + $0x8] sm:$0xff]
        %v349 = vld [vmem:[%s243 + $0x10] sm:$0xff]
        %v350 = vld [vmem:[%s243 + $0x18] sm:$0xff]
        %v351 = vld [vmem:[%s243 + $0x20] sm:$0xff]
        %v352 = vld [vmem:[%s243 + $0x28] sm:$0xff]
        %v353 = vld [vmem:[%s243 + $0x30] sm:$0xff]
        %v354 = vld [vmem:[%s243 + $0x38] sm:$0xff]
        %v355 = vld [vmem:[%s243 + $0x40] sm:$0xff]
        %v356 = vld [vmem:[%s243 + $0x48] sm:$0xff]
        %v357 = vld [vmem:[%s243 + $0x50] sm:$0xff]
        %v358 = vld [vmem:[%s243 + $0x58] sm:$0xff]
        %v359 = vld [vmem:[%s243 + $0x60] sm:$0xff]
        %v360 = vld [vmem:[%s243 + $0x68] sm:$0xff]
        %v361 = vld [vmem:[%s243 + $0x70] sm:$0xff]
        %v362 = vld [vmem:[%s243 + $0x78] sm:$0xff]
        %v363 = vld [vmem:[%s243 + $0x80] sm:$0xff]
        %v364 = vld [vmem:[%s243 + $0x88] sm:$0xff]
        %v365 = vld [vmem:[%s243 + $0x90] sm:$0xff]
        %v366 = vld [vmem:[%s243 + $0x98] sm:$0xff]
        %v367 = vld [vmem:[%s243 + $0xa0] sm:$0xff]
        %v368 = vld [vmem:[%s243 + $0xa8] sm:$0xff]
        %v369 = vld [vmem:[%s243 + $0xb0] sm:$0xff]
        %v370 = vld [vmem:[%s243 + $0xb8] sm:$0xff]
        %v371 = vld [vmem:[%s243 + $0xc0] sm:$0xff]
        %v372 = vld [vmem:[%s243 + $0xc8] sm:$0xff]
        %v373 = vld [vmem:[%s243 + $0xd0] sm:$0xff]
        %v374 = vld [vmem:[%s243 + $0xd8] sm:$0xff]
        %v375 = vld [vmem:[%s243 + $0xe0] sm:$0xff]
        %v376 = vld [vmem:[%s243 + $0xe8] sm:$0xff]
        %v377 = vld [vmem:[%s243 + $0xf0] sm:$0xff]
        %v378 = vld [vmem:[%s243 + $0xf8] sm:$0xff]
        %v411 = vunpack.c.l.b16 %v347
        %v412 = vunpack.c.h.b16 %v347
        %v413 = vunpack.c.l.b16 %v348
        %v414 = vunpack.c.h.b16 %v348
        %v415 = vunpack.c.l.b16 %v349
        %v416 = vunpack.c.h.b16 %v349
        %v417 = vunpack.c.l.b16 %v350
        %v418 = vunpack.c.h.b16 %v350
        %v419 = vunpack.c.l.b16 %v351
        %v420 = vunpack.c.h.b16 %v351
        %v421 = vunpack.c.l.b16 %v352
        %v422 = vunpack.c.h.b16 %v352
        %v423 = vunpack.c.l.b16 %v353
        %v424 = vunpack.c.h.b16 %v353
        %v425 = vunpack.c.l.b16 %v354
        %v426 = vunpack.c.h.b16 %v354
        %v427 = vunpack.c.l.b16 %v355
        %v428 = vunpack.c.h.b16 %v355
        %v429 = vunpack.c.l.b16 %v356
        %v430 = vunpack.c.h.b16 %v356
        %v431 = vunpack.c.l.b16 %v357
        %v432 = vunpack.c.h.b16 %v357
        %v433 = vunpack.c.l.b16 %v358
        %v434 = vunpack.c.h.b16 %v358
        %v435 = vunpack.c.l.b16 %v359
        %v436 = vunpack.c.h.b16 %v359
        %v437 = vunpack.c.l.b16 %v360
        %v438 = vunpack.c.h.b16 %v360
        %v439 = vunpack.c.l.b16 %v361
        %v440 = vunpack.c.h.b16 %v361
        %v441 = vunpack.c.l.b16 %v362
        %v442 = vunpack.c.h.b16 %v362
        %v443 = vunpack.c.l.b16 %v363
        %v444 = vunpack.c.h.b16 %v363
        %v445 = vunpack.c.l.b16 %v364
        %v446 = vunpack.c.h.b16 %v364
        %v447 = vunpack.c.l.b16 %v365
        %v448 = vunpack.c.h.b16 %v365
        %v449 = vunpack.c.l.b16 %v366
        %v450 = vunpack.c.h.b16 %v366
        %v451 = vunpack.c.l.b16 %v367
        %v452 = vunpack.c.h.b16 %v367
        %v453 = vunpack.c.l.b16 %v368
        %v454 = vunpack.c.h.b16 %v368
        %v455 = vunpack.c.l.b16 %v369
        %v456 = vunpack.c.h.b16 %v369
        %v457 = vunpack.c.l.b16 %v370
        %v458 = vunpack.c.h.b16 %v370
        %v459 = vunpack.c.l.b16 %v371
        %v460 = vunpack.c.h.b16 %v371
        %v461 = vunpack.c.l.b16 %v372
        %v462 = vunpack.c.h.b16 %v372
        %v463 = vunpack.c.l.b16 %v373
        %v464 = vunpack.c.h.b16 %v373
        %v465 = vunpack.c.l.b16 %v374
        %v466 = vunpack.c.h.b16 %v374
        %v467 = vunpack.c.l.b16 %v375
        %v468 = vunpack.c.h.b16 %v375
        %v469 = vunpack.c.l.b16 %v376
        %v470 = vunpack.c.h.b16 %v376
        %v471 = vunpack.c.l.b16 %v377
        %v472 = vunpack.c.h.b16 %v377
        %v473 = vunpack.c.l.b16 %v378
        %v474 = vunpack.c.h.b16 %v378
        %v475 = vpack.c.b16 %v415, %v411
        %v476 = vpack.c.b16 %v416, %v412
        %v477 = vpack.c.b16 %v417, %v413
        %v478 = vpack.c.b16 %v418, %v414
        %v479 = vpack.c.b16 %v423, %v419
        %v480 = vpack.c.b16 %v424, %v420
        %v481 = vpack.c.b16 %v425, %v421
        %v482 = vpack.c.b16 %v426, %v422
        %v483 = vpack.c.b16 %v431, %v427
        %v484 = vpack.c.b16 %v432, %v428
        %v485 = vpack.c.b16 %v433, %v429
        %v486 = vpack.c.b16 %v434, %v430
        %v487 = vpack.c.b16 %v439, %v435
        %v488 = vpack.c.b16 %v440, %v436
        %v489 = vpack.c.b16 %v441, %v437
        %v490 = vpack.c.b16 %v442, %v438
        %v491 = vpack.c.b16 %v447, %v443
        %v492 = vpack.c.b16 %v448, %v444
        %v493 = vpack.c.b16 %v449, %v445
        %v494 = vpack.c.b16 %v450, %v446
        %v495 = vpack.c.b16 %v455, %v451
        %v496 = vpack.c.b16 %v456, %v452
        %v497 = vpack.c.b16 %v457, %v453
        %v498 = vpack.c.b16 %v458, %v454
        %v499 = vpack.c.b16 %v463, %v459
        %v500 = vpack.c.b16 %v464, %v460
        %v501 = vpack.c.b16 %v465, %v461
        %v502 = vpack.c.b16 %v466, %v462
        %v503 = vpack.c.b16 %v471, %v467
        %v504 = vpack.c.b16 %v472, %v468
        %v505 = vpack.c.b16 %v473, %v469
        %v506 = vpack.c.b16 %v474, %v470
        %539 = vmatpush.bf16.msra.mxu0 %v503
        %540 = vmatpush.bf16.msra.mxu0 %v499
        %541 = vmatpush.bf16.msra.mxu0 %v495
        %542 = vmatpush.bf16.msra.mxu0 %v491
        %543 = vmatpush.bf16.msra.mxu0 %v487
        %544 = vmatpush.bf16.msra.mxu0 %v483
        %545 = vmatpush.bf16.msra.mxu0 %v479
        %546 = vmatpush.bf16.msra.mxu0 %v475
        %547 = vmatmul.bf16.gmra.mxu0 %v346
        %v548 = vpop.f32.mrf.mxu0
        %v549 = vadd.f32 0.0, %v548
        %v550 = vpop.f32.mrf.mxu0
        %551 = vdwg.mxu0
        %552 = vmatpush.bf16.msra.mxu0 %v504
        %553 = vmatpush.bf16.msra.mxu0 %v500
        %554 = vmatpush.bf16.msra.mxu0 %v496
        %555 = vmatpush.bf16.msra.mxu0 %v492
        %556 = vmatpush.bf16.msra.mxu0 %v488
        %557 = vmatpush.bf16.msra.mxu0 %v484
        %558 = vmatpush.bf16.msra.mxu0 %v480
        %559 = vmatpush.bf16.msra.mxu0 %v476
        %560 = vmatmul.bf16.gmra.mxu0 %v346
        %v561 = vpop.f32.mrf.mxu0
        %v562 = vadd.f32 0.0, %v561
        %v563 = vpop.f32.mrf.mxu0
        %564 = vdwg.mxu0
        %565 = vmatpush.bf16.msra.mxu0 %v505
        %566 = vmatpush.bf16.msra.mxu0 %v501
        %567 = vmatpush.bf16.msra.mxu0 %v497
        %568 = vmatpush.bf16.msra.mxu0 %v493
        %569 = vmatpush.bf16.msra.mxu0 %v489
        %570 = vmatpush.bf16.msra.mxu0 %v485
        %571 = vmatpush.bf16.msra.mxu0 %v481
        %572 = vmatpush.bf16.msra.mxu0 %v477
        %573 = vmatmul.bf16.gmra.mxu0 %v346
        %v574 = vpop.f32.mrf.mxu0
        %v575 = vadd.f32 0.0, %v574
        %v576 = vpop.f32.mrf.mxu0
        %577 = vdwg.mxu0
        %578 = vmatpush.bf16.msra.mxu0 %v506
        %579 = vmatpush.bf16.msra.mxu0 %v502
        %580 = vmatpush.bf16.msra.mxu0 %v498
        %581 = vmatpush.bf16.msra.mxu0 %v494
        %582 = vmatpush.bf16.msra.mxu0 %v490
        %583 = vmatpush.bf16.msra.mxu0 %v486
        %584 = vmatpush.bf16.msra.mxu0 %v482
        %585 = vmatpush.bf16.msra.mxu0 %v478
        %586 = vmatmul.bf16.gmra.mxu0 %v346
        %v587 = vpop.f32.mrf.mxu0
        %v588 = vadd.f32 0.0, %v587
        %v589 = vpop.f32.mrf.mxu0
        %590 = vdwg.mxu0
        %v591 = vld [vmem:[%s253] sm:$0xf]
        %v593 = vperm.slane %v591, 0
        %v594 = vperm.slane %v591, 1
        %v595 = vperm.slane %v591, 2
        %v596 = vperm.slane %v591, 3
        %v601 = vmul.f32 %v549, %v593
        %v602 = vmul.f32 %v562, %v594
        %v603 = vmul.f32 %v575, %v595
        %v604 = vmul.f32 %v588, %v596
        %v605 = vmax.f32 %v601, -1.0
        %v606 = vmax.f32 %v602, -1.0
        %v607 = vmax.f32 %v603, -1.0
        %v608 = vmax.f32 %v604, -1.0
        %v609 = vmin.f32 %v605, 1.0
        %v610 = vmin.f32 %v606, 1.0
        %v611 = vmin.f32 %v607, 1.0
        %v612 = vmin.f32 %v608, 1.0
        %v613 = vlaneseq
        %v614 = vand.u32 %v613, 127
        %v615 = vadd.s32 %v614, 128
        %v616 = vadd.s32 %v614, 256
        %v617 = vadd.s32 %v614, 384
        %s618 = smul.u32 %s26, 512
        %v619 = vstv %s618
        %v620 = vadd.s32 %v614, %v619
        %v621 = vadd.s32 %v615, %v619
        %v622 = vadd.s32 %v616, %v619
        %v623 = vadd.s32 %v617, %v619
        %v624 = vld [vmem:[%s300] sm:$0xff]
        %625 = vset.pattern.permute.xlu0 0
        %626 = vperm.xlu0 %625, %v624
        %v627 = vpop.permute.xlu0 %626
        %vm628 = vcmp.eq.s32.totalorder %v620, %v627
        %vm629 = vcmp.eq.s32.totalorder %v621, %v627
        %vm630 = vcmp.eq.s32.totalorder %v622, %v627
        %vm631 = vcmp.eq.s32.totalorder %v623, %v627
        %v632 = vsel %vm628, %v609, 0.0
        %v633 = vsel %vm629, %v610, 0.0
        %v634 = vsel %vm630, %v611, 0.0
        %v635 = vsel %vm631, %v612, 0.0
        %v636 = vadd.f32 %v632, %v633
        %v637 = vadd.f32 %v636, %v634
        %v638 = vadd.f32 %v637, %v635
        %639 = vadd.xlane.f32.xlu0 %v638
        %v640 = vpop.xlane.xlu0 %639
        %v641 = vmul.f32 %v640, %v640
        %v642 = vsub.f32 1.0, %v641
        %v643 = vmax.f32 %v642, 0.0
        %v644 = vrsqrt.pop %v643
        %v645 = vmul.f32 %v644, %v643
        %v646 = vmul.f32 %v645, %v644
        %v647 = vmul.f32 0.5, %v646
        %v648 = vsub.f32 1.5, %v647
        %v649 = vmul.f32 %v644, %v648
        %v650 = vmul.f32 %v643, %v649
        %vm651 = vcmp.eq.f32.partialorder %v643, inf
        %v652 = vsel %vm651, %v643, %v650
        %vm653 = vcmp.eq.f32.partialorder %v643, 0.0
        %v654 = vand.u32 %v643, 2147483648
        %v655 = vsel %vm653, %v654, %v652
        %v656 = vmul.f32 %v640, 0.87758255
        %v657 = vmul.f32 %v655, 0.47942555
        %v658 = vsub.f32 %v656, %v657
        %vm659 = vcmp.gt.f32.partialorder %v640, -0.87758255
        %v660 = vsub.f32 %v640, 0.4
        %v661 = vsel %vm659, %v658, %v660
        %v662 = vsel %vm628, %v661, %v609
        %v663 = vsel %vm629, %v661, %v610
        %v664 = vsel %vm630, %v661, %v611
        %v665 = vsel %vm631, %v661, %v612
        %v666 = vmul.f32 %v662, 64.0
        %v667 = vmul.f32 %v663, 64.0
        %v668 = vmul.f32 %v664, 64.0
        %v669 = vmul.f32 %v665, 64.0
        %vm670 = vcmp.lt.s32.totalorder %v620, 1500
        %vm671 = vcmp.lt.s32.totalorder %v621, 1500
        %vm672 = vcmp.lt.s32.totalorder %v622, 1500
        %vm673 = vcmp.lt.s32.totalorder %v623, 1500
        %v674 = vsel %vm670, %v666, -1e+30
        %v675 = vsel %vm671, %v667, -1e+30
        %v676 = vsel %vm672, %v668, -1e+30
        %v677 = vsel %vm673, %v669, -1e+30
        %v678 = vld [vmem:[#allocation4] sm:$0xff]
        %v679 = vsel %vm628, %v674, 0.0
        %v680 = vsel %vm629, %v675, 0.0
        %v681 = vsel %vm630, %v676, 0.0
        %v682 = vsel %vm631, %v677, 0.0
        %v683 = vadd.f32 %v679, %v680
        %v684 = vadd.f32 %v683, %v681
        %v685 = vadd.f32 %v684, %v682
        %686 = vadd.xlane.f32.xlu0 %v685
        %v687 = vpop.xlane.xlu0 %686
        %v688 = vadd.f32 %v678, %v687
        %vm689 = vcmask 7168
        %690 = vst.msk [vmem:[#allocation4] sm:$0xff] %vm689, %v688
        %v691 = vld [vmem:[#allocation2] sm:$0xff]
        %v692 = vmax.f32 %v674, %v675
        %v693 = vmax.f32 %v676, %v677
        %v694 = vmax.f32 %v692, %v693
        %695 = vmax.xlane.f32.xlu0 %v694
        %v696 = vpop.xlane.xlu0 %695
        %v697 = vmax.f32 %v691, %v696
        %v698 = vsub.f32 %v691, %v697
        %v699 = vmul.f32 %v698, 1.442695
        %v700 = vpow.pop %v699
        %v701 = vld [vmem:[#allocation3] sm:$0xff]
        %v702 = vmul.f32 %v701, %v700
        %704 = vset.pattern.permute.xlu0 0
        %705 = vperm.xlu0 %704, %v697
        %v706 = vpop.permute.xlu0 %705
        %v708 = vsub.f32 %v674, %v706
        %v709 = vsub.f32 %v675, %v706
        %v710 = vsub.f32 %v676, %v706
        %v711 = vsub.f32 %v677, %v706
        %v712 = vmul.f32 %v708, 1.442695
        %v713 = vpow.pop %v712
        %v714 = vmul.f32 %v709, 1.442695
        %v715 = vpow.pop %v714
        %v716 = vmul.f32 %v710, 1.442695
        %v717 = vpow.pop %v716
        %v718 = vmul.f32 %v711, 1.442695
        %v719 = vpow.pop %v718
        %v720 = vadd.f32 %v713, %v715
        %v721 = vadd.f32 %v720, %v717
        %v722 = vadd.f32 %v721, %v719
        %723 = vadd.xlane.f32.xlu0 %v722
        %v724 = vpop.xlane.xlu0 %723
        %v725 = vadd.f32 %v702, %v724
        %726 = vst.msk [vmem:[#allocation3] sm:$0xff] %vm689, %v725
        %727 = vst.msk [vmem:[#allocation2] sm:$0xff] %vm689, %v697
        %p728 = scmp.eq.s32.totalorder %s26, 2
        // Predicated region
        $region49: #{tpu_custom_call.1} parent=35 // pred_check
          %p729 = pneg %p728
        $region50: #{tpu_custom_call.1} parent=35 // pred_check_branch
          %731 = sbr.rel (%p729) target = $region52
        $region51: #{tpu_custom_call.1} parent=35 // pred_region
          %v732 = vld [vmem:[#allocation2] sm:$0xff]
          %v733 = vld [vmem:[#allocation3] sm:$0xff]
          %v734 = vlog2.pop %v733
          %v735 = vmul.f32 %v734, 0.6931472
          %v736 = vadd.f32 %v732, %v735
          %v737 = vld [vmem:[#allocation4] sm:$0xff]
          %v738 = vsub.f32 %v736, %v737
          %739 = vst.msk [vmem:[%s304] sm:$0xff] %vm689, %v738
        $region52: #{tpu_custom_call.1} parent=35 // pred_fallthru
          _
        %p740 = scmp.lt.s32.totalorder %s25, 1
        %s741 = scalar_select %p740, %s25, 1
        %s742 = smul.addr %s741, 8
        %s743 = scalar_lea.vmem %s4, %s742
        // Predicated region
        $region53: #{tpu_custom_call.1} parent=35 // pred_check
          %p744 = pneg %p155
        $region54: #{tpu_custom_call.1} parent=35 // pred_check_branch
          %746 = sbr.rel (%p744) target = $region56
        $region55: #{tpu_custom_call.1} parent=35 // pred_region
          _
        $region56: #{tpu_custom_call.1} parent=35 // pred_fallthru
          _
      $region36: #{tpu_custom_call.1} parent=5 // pred_fallthru
        _
      %p747 = scmp.le.s32.totalorder 2, %s16
      // Predicated region
      $region57: #{tpu_custom_call.1} parent=5 // pred_check
        %p748 = pneg %p747
      $region58: #{tpu_custom_call.1} parent=5 // pred_check_branch
        %750 = sbr.rel (%p748) target = $region60
      $region59: #{tpu_custom_call.1} parent=5 // pred_region
        %s751 = ssub.s32 %s16, 2
        // Predicated region
        $region61: #{tpu_custom_call.1} parent=59 // pred_check
          %p752 = pneg %p161
        $region62: #{tpu_custom_call.1} parent=59 // pred_check_branch
          %754 = sbr.rel (%p752) target = $region64
        $region63: #{tpu_custom_call.1} parent=59 // pred_region
          %p755 = scmp.lt.s32.totalorder %s27, 1
          %s756 = scalar_select %p755, %s27, 1
          %s757 = smul.addr %s756, 8
          %s758 = scalar_lea.vmem %s4, %s757
        $region64: #{tpu_custom_call.1} parent=59 // pred_fallthru
          _
      $region60: #{tpu_custom_call.1} parent=5 // pred_fallthru
        _
    $region6: #{tpu_custom_call.1} parent=1 // loop_footer
      %s20 = sadd.s32 1, %s16
    $region7: #{tpu_custom_call.1} parent=1 // loop_footer_branch
      %15 = sbr.rel target = $region3
    $region8: #{tpu_custom_call.1} parent=1 // loop_exit
      _
    %759 = vsyncpa [#allocation6], 1
    %s760 = scalar_lea.sflag [#allocation6], 1
    %761 = vsyncpa %s760, 1
    %762 = vsyncpa [#allocation8], 1
    %s763 = scalar_lea.sflag [#allocation8], 1
    %764 = vsyncpa %s763, 1

</llo_original>
